<compile_context>
chip_gen: v5e
topology: v5e:2x2
jax: 0.10.0
libtpu: 0.0.40
codegen_flags: <defaults>
</compile_context>

<pallas_src>
import functools

import jax
import jax.numpy as jnp
from jax.experimental import pallas as pl
from jax.experimental.pallas import tpu as pltpu


# Below this size a single whole-array DMA already hides issue latency and the
# op is dominated by custom-call dispatch (~0.35-1 us); chunking only adds
# descriptor overhead. Above it, several in-flight DMAs overlap descriptor
# issue and improve HBM utilization (modest, up to ~1.2x on multi-MB copies).
_CHUNKED_COPY_MIN_BYTES = 4 * 1024 * 1024
_MAX_COPY_CHUNKS = 8


def _single_dma_copy_kernel(mem_hbm, out_hbm, copy_sem):
    """out = memory with a single HBM->HBM DMA (no VMEM staging)."""
    cp = pltpu.make_async_copy(mem_hbm, out_hbm, copy_sem)
    cp.start()
    cp.wait()


def _chunked_dma_copy_kernel(chunks, mem_hbm, out_hbm, sems):
    """out = memory via K in-flight HBM->HBM DMAs (start all, then wait all).

    `chunks` is a static tuple of (start, size) slices along the leading axis,
    baked in at trace time; `sems` is a SemaphoreType.DMA((K,)) array.
    """
    copies = []
    for i, (start, size) in enumerate(chunks):
        cp = pltpu.make_async_copy(
            mem_hbm.at[pl.ds(start, size)],
            out_hbm.at[pl.ds(start, size)],
            sems.at[i],
        )
        cp.start()
        copies.append(cp)
    for cp in copies:
        cp.wait()


def _materialized_copy(memory, *, chunk_min_bytes=_CHUNKED_COPY_MIN_BYTES):
    """Distinct output buffer equal to `memory`, HBM->HBM DMA only."""
    out_shape = jax.ShapeDtypeStruct(memory.shape, memory.dtype)
    nbytes = memory.size * memory.dtype.itemsize
    leading = memory.shape[0] if memory.ndim >= 1 else 1

    # 2 * nbytes (read + write) is the minimum HBM traffic for a real copy.
    cost = pl.CostEstimate(flops=0, transcendentals=0,
                           bytes_accessed=2 * nbytes)
    hbm_spec = pl.BlockSpec(memory_space=pl.ANY)

    if nbytes < chunk_min_bytes or leading < 2:
        # Single whole-array DMA.
        return pl.pallas_call(
            _single_dma_copy_kernel,
            out_shape=out_shape,
            in_specs=[hbm_spec],
            out_specs=hbm_spec,
            scratch_shapes=[pltpu.SemaphoreType.DMA(())],
            cost_estimate=cost,
        )(memory)

    # Chunked copy: split the leading (seq) axis into <= _MAX_COPY_CHUNKS
    # pieces, one DMA + one semaphore each.
    n_chunks = min(_MAX_COPY_CHUNKS, leading)
    base, rem = divmod(leading, n_chunks)
    chunks = []
    start = 0
    for i in range(n_chunks):
        size = base + (1 if i < rem else 0)
        chunks.append((start, size))
        start += size

    return pl.pallas_call(
        functools.partial(_chunked_dma_copy_kernel, tuple(chunks)),
        out_shape=out_shape,
        in_specs=[hbm_spec],
        out_specs=hbm_spec,
        scratch_shapes=[pltpu.SemaphoreType.DMA((n_chunks,))],
        cost_estimate=cost,
    )(memory)


def dummy_decoder_forward(tgt, memory, tgt_mask=None, memory_mask=None,
                          tgt_key_padding_mask=None,
                          memory_key_padding_mask=None,
                          *, mode="passthrough"):
    """Pallas implementation of DummyDecoder.forward: returns `memory`.

    `tgt` and all mask arguments are accepted for signature parity and ignored,
    exactly as in the PyTorch module.

    mode:
      "passthrough" (default): return `memory` as-is. Zero HBM traffic, zero
          launch cost; matches PyTorch, which returns the same tensor. For
          in-place reuse of the buffer, combine with jax.jit donation
          (donate_argnums) instead of an aliasing kernel.
      "copy": distinct output buffer via HBM->HBM DMA only (single DMA for
          small tensors, chunked start-all/wait-all DMAs for >= 4 MiB).
    """
    del tgt, tgt_mask, memory_mask, tgt_key_padding_mask, memory_key_padding_mask

    if mode == "passthrough":
        return memory
    if mode == "copy":
        return _materialized_copy(memory)
    raise ValueError(f"unknown mode: {mode!r}")


if __name__ == "__main__":
    key = jax.random.PRNGKey(0)
    k_tgt, k_mem = jax.random.split(key)

    # (seq, batch, hidden) layout as used by nn.Transformer (batch_first=False).
    S, B, H = 8, 2, 32
    tgt = jax.random.normal(k_tgt, (S, B, H), dtype=jnp.float32)
    memory = jax.random.normal(k_mem, (S, B, H), dtype=jnp.float32)

    # Masks (ignored by DummyDecoder, passed for signature parity).
    tgt_mask = jnp.zeros((S, S), dtype=jnp.float32)
    memory_mask = None
    tgt_key_padding_mask = jnp.zeros((B, S), dtype=bool)
    memory_key_padding_mask = None

    # Default / hot path: zero-traffic pass-through (what PyTorch does).
    # Note: the object-identity check only holds outside jit; under jit the
    # semantics are still "output == memory" but identity is not preserved.
    out_fast = dummy_decoder_forward(tgt, memory, tgt_mask, memory_mask,
                                     tgt_key_padding_mask,
                                     memory_key_padding_mask)
    assert out_fast is memory

    # Kernel path 1: small tensor -> single whole-array HBM->HBM DMA.
    out_copy = dummy_decoder_forward(tgt, memory, tgt_mask, memory_mask,
                                     tgt_key_padding_mask,
                                     memory_key_padding_mask, mode="copy")
    out_copy = jax.block_until_ready(out_copy)
    assert out_copy.shape == memory.shape
    assert out_copy.dtype == memory.dtype
    assert bool(jnp.array_equal(out_copy, memory))

    # Kernel path 2: exercise the chunked multi-DMA path (normally gated on
    # nbytes >= 4 MiB) by forcing the threshold to 0 at the same small shape.
    out_chunked = _materialized_copy(memory, chunk_min_bytes=0)
    out_chunked = jax.block_until_ready(out_chunked)
    assert out_chunked.shape == memory.shape
    assert out_chunked.dtype == memory.dtype
    assert bool(jnp.array_equal(out_chunked, memory))

    print("KERNEL_OK")
</pallas_src>

<mosaic_0001>
module attributes {stable_mosaic.version = 11 : i64} {
  func.func @_single_dma_copy_kernel(%arg0: memref<8x2x32xf32, #tpu.memory_space<any>>, %arg1: memref<8x2x32xf32, #tpu.memory_space<any>>, %arg2: memref<!tpu.dma_semaphore, #tpu.memory_space<semaphore_mem>>) attributes {dimension_semantics = [], scalar_prefetch = 0 : i64, scratch_operands = 1 : i64, tpu.core_type = #tpu.core_type<tc>} {
    tpu.enqueue_dma source(%arg0 : memref<8x2x32xf32, #tpu.memory_space<any>>) target(%arg1 : memref<8x2x32xf32, #tpu.memory_space<any>>) target_semaphore(%arg2 : memref<!tpu.dma_semaphore, #tpu.memory_space<semaphore_mem>>)
    tpu.wait_dma2 semaphore(%arg2 : memref<!tpu.dma_semaphore, #tpu.memory_space<semaphore_mem>>) src(%arg0 : memref<8x2x32xf32, #tpu.memory_space<any>>) dst(%arg1 : memref<8x2x32xf32, #tpu.memory_space<any>>)
    return
  }
}

</mosaic_0001>

<llo_original>
// kernel: tpu_custom_call.1
$region0: #{tpu_custom_call.1}
  #allocation0 [shape = 'u32[]', space=smem, size = 0x4, offset = 0x4, fixed_abs, tag = 'smem constant byte address 0x4 - core index']
  #allocation1 [shape = 'u32[72,128]{1,0:T(1,128)}', space=vmem, size = 0x9000, scoped, tag = 'internal scratch']
  #allocation2 [shape = 's32[1]{0}', space=sflag, size = 0x4, scoped, tag = 'scratch operand']
  #allocation3 [shape = 's32[]', space=sflag, size = 0x4, offset = 0, fixed_abs, tag = 'sflag constant byte address 0x0 - dummy sync flag']
  #allocation4 [shape = 'u32[0]{0}', space=smem, size = 0, offset = 0, fixed_abs, tag = 'smem constant byte address 0x0 - null']
  %s0 = inlined_call_operand.hbm [shape: f32[8,2,32], index: 0, kind: input, shape index: {}]
  %s1 = inlined_call_operand.hbm [shape: f32[8,2,32], index: 1, kind: output, shape index: {}]
  %s2 = sld [smem:[#allocation0]]
  $region2: #{tpu_custom_call.1} parent=0
    _
  %s4 = ssub.s32 1, %s2
  %s5 = scalar_select 0, %s4, %s2
  %s7 = sshll.u32 1, 14
  %s8 = sxor.u32 4294967295, %s7
  %s10 = sshll.u32 %s0, 4
  %s11 = int_to_ptr.hbm [resolvable:$true] %s10
  %s12 = sshll.u32 %s1, 4
  %s13 = int_to_ptr.hbm [resolvable:$true] %s12
  %16 = dma.general %s11, 256, %s13, [#allocation2], [#allocation3], [#allocation4], 0, 0
  %s17 = smul.u32 8, 2
  %s18 = smul.u32 %s17, 1
  %s19 = sshll.u32 %s18, 4
  %20 = dma.done [#allocation2], %s19
  %21 = vsyncmov [#allocation2]
  %s22 = vpop.sfrf %21
  %p23 = scmp.eq.s32.totalorder %s22, 0
  %p24 = pneg %p23
  %26 = shalt.err (%p24)

</llo_original>
